<compile_context>
chip_gen: v7x
topology: tpu7x:2x2x1
jax: 0.10.0
libtpu: 0.0.40
codegen_flags: <defaults>
</compile_context>

<pallas_src>
import jax
import jax.numpy as jnp
from jax.experimental import pallas as pl
from jax.experimental.pallas import tpu as pltpu

# Squeeze sentinel for the leading style dim of the fused residual weights
# (older Pallas versions spell it `None`).
_SQUEEZED = pl.Squeezed() if hasattr(pl, "Squeezed") else None


def _leaky(x, slope=0.2):
    return jnp.where(x > 0, x, slope * x)


def fc_kernel(style_ref,                       # scalar-prefetch (SMEM) — used by index_maps
              x_ref, w1_ref, b1_ref,
              w2r_ref, b2r_ref,                # fused [fc2 | residual[style]] weights
              w3_ref, b3_ref,
              o_ref):
    del style_ref  # style selection already happened in the BlockSpec index_map
    f32 = jnp.float32

    # fc1 + LeakyReLU  (bf16 operands, f32 accumulation)
    mid = _leaky(jnp.dot(x_ref[...], w1_ref[...], preferred_element_type=f32)
                 + b1_ref[...])

    # fused fc2 + residual[style]: single (512, 256) matmul, then split halves.
    mid_bf = mid.astype(w2r_ref.dtype)
    h = _leaky(jnp.dot(mid_bf, w2r_ref[...], preferred_element_type=f32)
               + b2r_ref[...])
    half = h.shape[-1] // 2
    s = (h[:, :half] + h[:, half:]).astype(w3_ref.dtype)

    # fc3 + LeakyReLU (output lanes padded to 128 — padding cols stay 0)
    o_ref[...] = _leaky(jnp.dot(s, w3_ref[...], preferred_element_type=f32)
                        + b3_ref[...])


def prepare_params(params, lane=128):
    """Build fused / bf16 / lane-padded operands from plain f32 params."""
    bf = jnp.bfloat16
    f32 = jnp.float32
    S = params["wr"].shape[0]

    # [w2 | wr[s]] stacked per style -> (S, 512, 256); same for biases.
    w2r = jnp.concatenate(
        [jnp.broadcast_to(params["w2"][None], (S,) + params["w2"].shape),
         params["wr"]], axis=-1).astype(bf)
    b2r = jnp.concatenate(
        [jnp.broadcast_to(params["b2"][None], (S,) + params["b2"].shape),
         params["br"]], axis=-1).astype(f32)

    d_out = params["w3"].shape[1]
    pad = (-d_out) % lane
    w3 = jnp.pad(params["w3"], ((0, 0), (0, pad))).astype(bf)
    b3 = jnp.pad(params["b3"], ((0, 0), (0, pad))).astype(f32)

    return {
        "w1": params["w1"].astype(bf),
        "b1": params["b1"].astype(f32),
        "w2r": w2r, "b2r": b2r,
        "w3": w3, "b3": b3,
        "d_out": d_out,
    }


def fc_forward(x, prep, style_num, *, block_b=256):
    """x: (B, input_length) f32/bf16. prep: output of prepare_params."""
    B, d_in = x.shape
    S, k_mid, n_fused = prep["w2r"].shape          # (styles, 512, 256)
    d_pad = prep["w3"].shape[1]                    # lane-padded out width (128)
    d_out = prep["d_out"]

    tb = min(block_b, B)                           # batch tile (multiple of 8 or == B)
    grid = (pl.cdiv(B, tb),)

    x_bf = x.astype(jnp.bfloat16)
    style_arr = jnp.asarray([style_num], dtype=jnp.int32)

    def resident(arr):
        # full-array block, same index every grid step -> DMA'd once, stays in VMEM
        return pl.BlockSpec(arr.shape, lambda i, s, _n=arr.ndim: (0,) * _n)

    grid_spec = pltpu.PrefetchScalarGridSpec(
        num_scalar_prefetch=1,
        grid=grid,
        in_specs=[
            pl.BlockSpec((tb, d_in), lambda i, s: (i, 0)),           # x (batch-tiled)
            resident(prep["w1"]), resident(prep["b1"]),              # fc1
            pl.BlockSpec((_SQUEEZED, k_mid, n_fused),                # fused fc2|residual
                         lambda i, s: (s[0], 0, 0)),
            pl.BlockSpec((_SQUEEZED, 1, n_fused),
                         lambda i, s: (s[0], 0, 0)),
            resident(prep["w3"]), resident(prep["b3"]),              # fc3 (padded)
        ],
        out_specs=pl.BlockSpec((tb, d_pad), lambda i, s: (i, 0)),
    )

    flops = 2 * B * (d_in * k_mid + k_mid * n_fused + (n_fused // 2) * d_pad)
    bytes_accessed = (x_bf.nbytes
                      + prep["w1"].nbytes + prep["b1"].nbytes
                      + prep["w2r"].nbytes // S + prep["b2r"].nbytes // S
                      + prep["w3"].nbytes + prep["b3"].nbytes
                      + B * d_pad * 4)

    out = pl.pallas_call(
        fc_kernel,
        out_shape=jax.ShapeDtypeStruct((B, d_pad), jnp.float32),
        grid_spec=grid_spec,
        compiler_params=pltpu.CompilerParams(
            dimension_semantics=("parallel",)),
        cost_estimate=pl.CostEstimate(
            flops=flops, transcendentals=0, bytes_accessed=bytes_accessed),
    )(style_arr, x_bf,
      prep["w1"], prep["b1"],
      prep["w2r"], prep["b2r"],
      prep["w3"], prep["b3"])

    return out[:, :d_out]


def fc_reference(x, params, style_num):
    """Pure-JAX reference emulating the kernel's bf16-operand / f32-accum math."""
    f32 = jnp.float32

    def mm(a, w):
        return jnp.dot(a.astype(jnp.bfloat16).astype(f32),
                       w.astype(jnp.bfloat16).astype(f32))

    mid = _leaky(mm(x, params["w1"]) + params["b1"])
    h2 = _leaky(mm(mid, params["w2"]) + params["b2"])
    hr = _leaky(mm(mid, params["wr"][style_num]) + params["br"][style_num])
    return _leaky(mm(h2 + hr, params["w3"]) + params["b3"])


def init_params(key, input_length, output_length, max_style_num):
    ks = jax.random.split(key, 8)
    scale = 0.05
    return {
        "w1": scale * jax.random.normal(ks[0], (input_length, 512), jnp.float32),
        "b1": scale * jax.random.normal(ks[1], (1, 512), jnp.float32),
        "w2": scale * jax.random.normal(ks[2], (512, 128), jnp.float32),
        "b2": scale * jax.random.normal(ks[3], (1, 128), jnp.float32),
        "wr": scale * jax.random.normal(ks[4], (max_style_num, 512, 128), jnp.float32),
        "br": scale * jax.random.normal(ks[5], (max_style_num, 1, 128), jnp.float32),
        "w3": scale * jax.random.normal(ks[6], (128, output_length), jnp.float32),
        "b3": scale * jax.random.normal(ks[7], (1, output_length), jnp.float32),
    }


if __name__ == "__main__":
    key = jax.random.PRNGKey(0)
    input_length, output_length, max_style_num = 32, 16, 3
    batch = 8
    style_num = 1

    kp, kx = jax.random.split(key)
    params = init_params(kp, input_length, output_length, max_style_num)
    x = jax.random.normal(kx, (batch, input_length), jnp.float32)

    prep = prepare_params(params)
    out = fc_forward(x, prep, style_num)
    out = jax.block_until_ready(out)

    ref = fc_reference(x, params, style_num)
    assert out.shape == (batch, output_length)
    assert jnp.allclose(out, ref, atol=1e-3, rtol=1e-3), "mismatch vs reference"

    print("KERNEL_OK")
</pallas_src>

<mosaic_0001>
module attributes {stable_mosaic.version = 11 : i64} {
  func.func @fc_kernel(%arg0: i32, %arg1: memref<1xi32, #tpu.memory_space<smem>>, %arg2: memref<8x32xbf16, #tpu.memory_space<vmem>>, %arg3: memref<32x512xbf16, #tpu.memory_space<vmem>>, %arg4: memref<1x512xf32, #tpu.memory_space<vmem>>, %arg5: memref<1x512x256xbf16, #tpu.memory_space<vmem>>, %arg6: memref<1x1x256xf32, #tpu.memory_space<vmem>>, %arg7: memref<128x128xbf16, #tpu.memory_space<vmem>>, %arg8: memref<1x128xf32, #tpu.memory_space<vmem>>, %arg9: memref<8x128xf32, #tpu.memory_space<vmem>>) attributes {dimension_semantics = [#tpu.dimension_semantics<parallel>], iteration_bounds = array<i64: 1>, scalar_prefetch = 1 : i64, scratch_operands = 0 : i64, tpu.core_type = #tpu.core_type<tc>, window_params = [{transform_indices = @transform_0, window_bounds = array<i64: 8, 32>}, {pipeline_mode = #tpu.pipeline_mode<synchronous>, transform_indices = @transform_1, window_bounds = array<i64: 32, 512>}, {pipeline_mode = #tpu.pipeline_mode<synchronous>, transform_indices = @transform_2, window_bounds = array<i64: 1, 512>}, {transform_indices = @transform_3, window_bounds = array<i64: 1, 512, 256>}, {transform_indices = @transform_4, window_bounds = array<i64: 1, 1, 256>}, {pipeline_mode = #tpu.pipeline_mode<synchronous>, transform_indices = @transform_5, window_bounds = array<i64: 128, 128>}, {pipeline_mode = #tpu.pipeline_mode<synchronous>, transform_indices = @transform_6, window_bounds = array<i64: 1, 128>}, {transform_indices = @transform_7, window_bounds = array<i64: 8, 128>}]} {
    %c0 = arith.constant 0 : index
    %c0_0 = arith.constant 0 : index
    %0 = vector.load %arg2[%c0, %c0_0] : memref<8x32xbf16, #tpu.memory_space<vmem>>, vector<8x32xbf16>
    %c0_1 = arith.constant 0 : index
    %c0_2 = arith.constant 0 : index
    %1 = vector.load %arg3[%c0_1, %c0_2] : memref<32x512xbf16, #tpu.memory_space<vmem>>, vector<32x512xbf16>
    %cst = arith.constant dense<0.000000e+00> : vector<8x512xf32>
    %2 = tpu.matmul %0, %1, %cst {dimension_numbers = #tpu.dot_dimension_numbers<[1], [0], [0], [1], [0, 0, 1, 1], [], []>} : vector<8x32xbf16>, vector<32x512xbf16>, vector<8x512xf32> -> vector<8x512xf32>
    %c0_3 = arith.constant 0 : index
    %c0_4 = arith.constant 0 : index
    %3 = vector.load %arg4[%c0_3, %c0_4] : memref<1x512xf32, #tpu.memory_space<vmem>>, vector<1x512xf32>
    %4 = vector.broadcast %3 : vector<1x512xf32> to vector<8x512xf32>
    %5 = arith.addf %2, %4 : vector<8x512xf32>
    %cst_5 = arith.constant 0.000000e+00 : f32
    %6 = vector.broadcast %cst_5 : f32 to vector<8x512xf32>
    %7 = arith.cmpf ogt, %5, %6 : vector<8x512xf32>
    %cst_6 = arith.constant 2.000000e-01 : f32
    %8 = vector.broadcast %cst_6 : f32 to vector<8x512xf32>
    %9 = arith.mulf %8, %5 : vector<8x512xf32>
    %10 = arith.select %7, %5, %9 : vector<8x512xi1>, vector<8x512xf32>
    %11 = arith.truncf %10 : vector<8x512xf32> to vector<8x512xbf16>
    %c0_7 = arith.constant 0 : index
    %c0_8 = arith.constant 0 : index
    %c0_9 = arith.constant 0 : index
    %12 = vector.load %arg5[%c0_7, %c0_8, %c0_9] : memref<1x512x256xbf16, #tpu.memory_space<vmem>>, vector<1x512x256xbf16>
    %13 = vector.shape_cast %12 : vector<1x512x256xbf16> to vector<512x256xbf16>
    %cst_10 = arith.constant dense<0.000000e+00> : vector<8x256xf32>
    %14 = tpu.matmul %11, %13, %cst_10 {dimension_numbers = #tpu.dot_dimension_numbers<[1], [0], [0], [1], [0, 0, 1, 1], [], []>} : vector<8x512xbf16>, vector<512x256xbf16>, vector<8x256xf32> -> vector<8x256xf32>
    %c0_11 = arith.constant 0 : index
    %c0_12 = arith.constant 0 : index
    %c0_13 = arith.constant 0 : index
    %15 = vector.load %arg6[%c0_11, %c0_12, %c0_13] : memref<1x1x256xf32, #tpu.memory_space<vmem>>, vector<1x1x256xf32>
    %16 = vector.shape_cast %15 : vector<1x1x256xf32> to vector<1x256xf32>
    %17 = vector.broadcast %16 : vector<1x256xf32> to vector<8x256xf32>
    %18 = arith.addf %14, %17 : vector<8x256xf32>
    %cst_14 = arith.constant 0.000000e+00 : f32
    %19 = vector.broadcast %cst_14 : f32 to vector<8x256xf32>
    %20 = arith.cmpf ogt, %18, %19 : vector<8x256xf32>
    %cst_15 = arith.constant 2.000000e-01 : f32
    %21 = vector.broadcast %cst_15 : f32 to vector<8x256xf32>
    %22 = arith.mulf %21, %18 : vector<8x256xf32>
    %23 = arith.select %20, %18, %22 : vector<8x256xi1>, vector<8x256xf32>
    %24 = vector.extract_strided_slice %23 {offsets = [0, 0], sizes = [8, 128], strides = [1, 1]} : vector<8x256xf32> to vector<8x128xf32>
    %25 = vector.extract_strided_slice %23 {offsets = [0, 128], sizes = [8, 128], strides = [1, 1]} : vector<8x256xf32> to vector<8x128xf32>
    %26 = arith.addf %24, %25 : vector<8x128xf32>
    %27 = arith.truncf %26 : vector<8x128xf32> to vector<8x128xbf16>
    %c0_16 = arith.constant 0 : index
    %c0_17 = arith.constant 0 : index
    %28 = vector.load %arg7[%c0_16, %c0_17] : memref<128x128xbf16, #tpu.memory_space<vmem>>, vector<128x128xbf16>
    %cst_18 = arith.constant dense<0.000000e+00> : vector<8x128xf32>
    %29 = tpu.matmul %27, %28, %cst_18 {dimension_numbers = #tpu.dot_dimension_numbers<[1], [0], [0], [1], [0, 0, 1, 1], [], []>} : vector<8x128xbf16>, vector<128x128xbf16>, vector<8x128xf32> -> vector<8x128xf32>
    %c0_19 = arith.constant 0 : index
    %c0_20 = arith.constant 0 : index
    %30 = vector.load %arg8[%c0_19, %c0_20] : memref<1x128xf32, #tpu.memory_space<vmem>>, vector<1x128xf32>
    %31 = vector.broadcast %30 : vector<1x128xf32> to vector<8x128xf32>
    %32 = arith.addf %29, %31 : vector<8x128xf32>
    %cst_21 = arith.constant 0.000000e+00 : f32
    %33 = vector.broadcast %cst_21 : f32 to vector<8x128xf32>
    %34 = arith.cmpf ogt, %32, %33 : vector<8x128xf32>
    %cst_22 = arith.constant 2.000000e-01 : f32
    %35 = vector.broadcast %cst_22 : f32 to vector<8x128xf32>
    %36 = arith.mulf %35, %32 : vector<8x128xf32>
    %37 = arith.select %34, %32, %36 : vector<8x128xi1>, vector<8x128xf32>
    %c0_23 = arith.constant 0 : index
    %c0_24 = arith.constant 0 : index
    %38 = vector.load %arg9[%c0_23, %c0_24] : memref<8x128xf32, #tpu.memory_space<vmem>>, vector<8x128xf32>
    tpu.vector_store %arg9[%c0_23, %c0_24], %37 {strides = array<i32>} : memref<8x128xf32, #tpu.memory_space<vmem>>, vector<8x128xf32>,
    return
  }
  func.func @transform_0(%arg0: i32, %arg1: memref<1xi32, #tpu.memory_space<smem>>) -> (i32, i32) {
    %c0_i32 = arith.constant 0 : i32
    %c0_i32_0 = arith.constant 0 : i32
    return %arg0, %c0_i32 : i32, i32
  }
  func.func @transform_1(%arg0: i32, %arg1: memref<1xi32, #tpu.memory_space<smem>>) -> (i32, i32) {
    %c0_i32 = arith.constant 0 : i32
    %c0_i32_0 = arith.constant 0 : i32
    %c0_i32_1 = arith.constant 0 : i32
    return %c0_i32, %c0_i32_0 : i32, i32
  }
  func.func @transform_2(%arg0: i32, %arg1: memref<1xi32, #tpu.memory_space<smem>>) -> (i32, i32) {
    %c0_i32 = arith.constant 0 : i32
    %c0_i32_0 = arith.constant 0 : i32
    %c0_i32_1 = arith.constant 0 : i32
    return %c0_i32, %c0_i32_0 : i32, i32
  }
  func.func @transform_3(%arg0: i32, %arg1: memref<1xi32, #tpu.memory_space<smem>>) -> (i32, i32, i32) {
    %c0 = arith.constant 0 : index
    %0 = memref.load %arg1[%c0] : memref<1xi32, #tpu.memory_space<smem>>
    %c0_i32 = arith.constant 0 : i32
    %c0_i32_0 = arith.constant 0 : i32
    %c0_i32_1 = arith.constant 0 : i32
    return %0, %c0_i32, %c0_i32_0 : i32, i32, i32
  }
  func.func @transform_4(%arg0: i32, %arg1: memref<1xi32, #tpu.memory_space<smem>>) -> (i32, i32, i32) {
    %c0 = arith.constant 0 : index
    %0 = memref.load %arg1[%c0] : memref<1xi32, #tpu.memory_space<smem>>
    %c0_i32 = arith.constant 0 : i32
    %c0_i32_0 = arith.constant 0 : i32
    %c0_i32_1 = arith.constant 0 : i32
    return %0, %c0_i32, %c0_i32_0 : i32, i32, i32
  }
  func.func @transform_5(%arg0: i32, %arg1: memref<1xi32, #tpu.memory_space<smem>>) -> (i32, i32) {
    %c0_i32 = arith.constant 0 : i32
    %c0_i32_0 = arith.constant 0 : i32
    %c0_i32_1 = arith.constant 0 : i32
    return %c0_i32, %c0_i32_0 : i32, i32
  }
  func.func @transform_6(%arg0: i32, %arg1: memref<1xi32, #tpu.memory_space<smem>>) -> (i32, i32) {
    %c0_i32 = arith.constant 0 : i32
    %c0_i32_0 = arith.constant 0 : i32
    %c0_i32_1 = arith.constant 0 : i32
    return %c0_i32, %c0_i32_0 : i32, i32
  }
  func.func @transform_7(%arg0: i32, %arg1: memref<1xi32, #tpu.memory_space<smem>>) -> (i32, i32) {
    %c0_i32 = arith.constant 0 : i32
    %c0_i32_0 = arith.constant 0 : i32
    return %arg0, %c0_i32 : i32, i32
  }
}

</mosaic_0001>

<llo_original>
// kernel: tpu_custom_call.1
$region0: #{tpu_custom_call.1}
  #allocation0 [shape = 'u32[]', space=smem, size = 0x4, offset = 0x4, fixed_abs, tag = 'smem constant byte address 0x4 - core index']
  #allocation1 [shape = 'u32[144,128]{1,0:T(1,128)}', space=vmem, size = 0x12000, scoped, tag = 'internal scratch']
  #allocation2 [shape = 's32[1]{0}', space=sflag, size = 0x4, scoped, tag = 'scoped memory for tpu_custom_call.1']
  #allocation3 [shape = 's32[1]{0:T(128)S(6)}', space=smem, size = 0x200, scoped, tag = 'prefetched SMEM operand 0']
  %s0 = inlined_call_operand.<no memory space> [shape: s32[1], index: 0, kind: input, shape index: {}]
  %s1 = inlined_call_operand.hbm [shape: bf16[8,32], index: 1, kind: input, shape index: {}]
  %s2 = inlined_call_operand.hbm [shape: bf16[32,512], index: 2, kind: input, shape index: {}]
  %s3 = inlined_call_operand.vmem [shape: f32[1,512], index: 3, kind: input, shape index: {}]
  %s4 = inlined_call_operand.hbm [shape: bf16[3,512,256], index: 4, kind: input, shape index: {}]
  %s5 = inlined_call_operand.vmem [shape: f32[3,1,256], index: 5, kind: input, shape index: {}]
  %s6 = inlined_call_operand.hbm [shape: bf16[128,128], index: 6, kind: input, shape index: {}]
  %s7 = inlined_call_operand.vmem [shape: f32[1,128], index: 7, kind: input, shape index: {}]
  %s8 = inlined_call_operand.hbm [shape: f32[8,128], index: 8, kind: output, shape index: {}]
  %s9 = sld [smem:[#allocation0]]
  $region54: #{tpu_custom_call.1} parent=0
    _
  %s11 = ssub.s32 1, %s9
  %s12 = scalar_select 0, %s11, %s9
  %13 = sst [smem:[#allocation3]] %s0
  $region1: #{tpu_custom_call.1} parent=0
    #allocation4 [shape = 'u8[2048]{0}', space=vmem, size = 0x800, scoped, tag = 'input window, operand 1, single buffered']
    #allocation5 [shape = 's32[1]{0}', space=sflag, size = 0x4, scoped, tag = 'scoped memory for tpu_custom_call.1']
    #allocation6 [shape = 's32[1]{0}', space=sflag, size = 0x4, scoped, tag = 'scoped memory for tpu_custom_call.1']
    #allocation7 [shape = 'u8[32768]{0}', space=vmem, size = 0x8000, scoped, tag = 'input window, operand 2, single buffered']
    #allocation8 [shape = 's32[1]{0}', space=sflag, size = 0x4, scoped, tag = 'scoped memory for tpu_custom_call.1']
    #allocation9 [shape = 'u8[262144]{0}', space=vmem, size = 0x40000, scoped, tag = 'input window, operand 4, single buffered']
    #allocation10 [shape = 'u8[32768]{0}', space=vmem, size = 0x8000, scoped, tag = 'input window, operand 6, single buffered']
    #allocation11 [shape = 's32[1]{0}', space=sflag, size = 0x4, scoped, tag = 'scoped memory for tpu_custom_call.1']
    #allocation12 [shape = 'u8[4096]{0}', space=vmem, size = 0x1000, scoped, tag = 'output window, operand 0, single buffered']
    %14 = vsyncpa [#allocation5], 0
    %15 = vsyncpa [#allocation8], 0
    %16 = vsyncpa [#allocation11], 0
    %17 = vsyncpa [#allocation6], 0
    // Predicated region
    $region2: #{tpu_custom_call.1} parent=1 // pred_check
      _
    $region3: #{tpu_custom_call.1} parent=1 // pred_check_branch
      %19 = sbr.rel (0) target = $region5
    $region4: #{tpu_custom_call.1} parent=1 // pred_region
      %s21 = ssub.s32 64, 64
      %22 = vsyncadd [#allocation5], %s21
      %s24 = sshll.u32 [#allocation4], 4
      %s25 = int_to_ptr.vmem [resolvable:$true] %s24
      %27 = dma.hbm_to_vmem [thread:$0]  %s1, 64, %s25, [#allocation5]
    $region5: #{tpu_custom_call.1} parent=1 // pred_fallthru
      _
    // Predicated region
    $region6: #{tpu_custom_call.1} parent=1 // pred_check
      _
    $region7: #{tpu_custom_call.1} parent=1 // pred_check_branch
      %29 = sbr.rel (0) target = $region9
    $region8: #{tpu_custom_call.1} parent=1 // pred_region
      %s31 = ssub.s32 1024, 1024
      %32 = vsyncadd [#allocation8], %s31
      %s33 = sshll.u32 [#allocation7], 4
      %s34 = int_to_ptr.vmem [resolvable:$true] %s33
      %39 = dma.hbm_to_vmem [thread:$0]  %s2, 1024, %s34, [#allocation8], 256, 256, 16
    $region9: #{tpu_custom_call.1} parent=1 // pred_fallthru
      _
    // Predicated region
    $region10: #{tpu_custom_call.1} parent=1 // pred_check
      _
    $region11: #{tpu_custom_call.1} parent=1 // pred_check_branch
      %41 = sbr.rel (0) target = $region13
    $region12: #{tpu_custom_call.1} parent=1 // pred_region
      _
    $region13: #{tpu_custom_call.1} parent=1 // pred_fallthru
      _
    // Predicated region
    $region14: #{tpu_custom_call.1} parent=1 // pred_check
      _
    $region15: #{tpu_custom_call.1} parent=1 // pred_check_branch
      %43 = sbr.rel (0) target = $region17
    $region16: #{tpu_custom_call.1} parent=1 // pred_region
      %s44 = sld [smem:[#allocation3]]
      %s46 = ssub.s32 8192, 8192
      %47 = vsyncadd [#allocation8], %s46
      %s48 = smul.addr %s44, 128
      %s49 = smul.addr %s48, 64
      %s50 = scalar_lea.hbm %s4, %s49
      %s51 = sshll.u32 [#allocation9], 4
      %s52 = int_to_ptr.vmem [resolvable:$true] %s51
      %57 = dma.hbm_to_vmem [thread:$0]  %s50, 8192, %s52, [#allocation8], 128, 128, 8
    $region17: #{tpu_custom_call.1} parent=1 // pred_fallthru
      _
    // Predicated region
    $region18: #{tpu_custom_call.1} parent=1 // pred_check
      _
    $region19: #{tpu_custom_call.1} parent=1 // pred_check_branch
      %59 = sbr.rel (0) target = $region21
    $region20: #{tpu_custom_call.1} parent=1 // pred_region
      %s60 = sld [smem:[#allocation3]]
      %p61 = scmp.lt.s32.totalorder %s60, 2
      %s62 = scalar_select %p61, %s60, 2
      %s63 = smul.addr %s62, 2
      %s64 = scalar_lea.vmem %s5, %s63
      %s65 = sld [smem:[#allocation3]]
    $region21: #{tpu_custom_call.1} parent=1 // pred_fallthru
      _
    // Predicated region
    $region22: #{tpu_custom_call.1} parent=1 // pred_check
      _
    $region23: #{tpu_custom_call.1} parent=1 // pred_check_branch
      %67 = sbr.rel (0) target = $region25
    $region24: #{tpu_custom_call.1} parent=1 // pred_region
      %s69 = ssub.s32 1024, 1024
      %70 = vsyncadd [#allocation11], %s69
      %s71 = sshll.u32 [#allocation10], 4
      %s72 = int_to_ptr.vmem [resolvable:$true] %s71
      %77 = dma.hbm_to_vmem [thread:$0]  %s6, 1024, %s72, [#allocation11], 64, 64, 4
    $region25: #{tpu_custom_call.1} parent=1 // pred_fallthru
      _
    // Predicated region
    $region26: #{tpu_custom_call.1} parent=1 // pred_check
      _
    $region27: #{tpu_custom_call.1} parent=1 // pred_check_branch
      %79 = sbr.rel (0) target = $region29
    $region28: #{tpu_custom_call.1} parent=1 // pred_region
      _
    $region29: #{tpu_custom_call.1} parent=1 // pred_fallthru
      _
    // Predicated region
    $region30: #{tpu_custom_call.1} parent=1 // pred_check
      _
    $region31: #{tpu_custom_call.1} parent=1 // pred_check_branch
      %81 = sbr.rel (0) target = $region33
    $region32: #{tpu_custom_call.1} parent=1 // pred_region
      %82 = dma.done [#allocation5], 64
    $region33: #{tpu_custom_call.1} parent=1 // pred_fallthru
      _
    // Predicated region
    $region34: #{tpu_custom_call.1} parent=1 // pred_check
      _
    $region35: #{tpu_custom_call.1} parent=1 // pred_check_branch
      %84 = sbr.rel (0) target = $region37
    $region36: #{tpu_custom_call.1} parent=1 // pred_region
      %85 = dma.done [#allocation8], 1024
    $region37: #{tpu_custom_call.1} parent=1 // pred_fallthru
      _
    // Predicated region
    $region38: #{tpu_custom_call.1} parent=1 // pred_check
      _
    $region39: #{tpu_custom_call.1} parent=1 // pred_check_branch
      %87 = sbr.rel (0) target = $region41
    $region40: #{tpu_custom_call.1} parent=1 // pred_region
      %88 = dma.done [#allocation8], 8192
    $region41: #{tpu_custom_call.1} parent=1 // pred_fallthru
      _
    // Predicated region
    $region42: #{tpu_custom_call.1} parent=1 // pred_check
      _
    $region43: #{tpu_custom_call.1} parent=1 // pred_check_branch
      %90 = sbr.rel (0) target = $region45
    $region44: #{tpu_custom_call.1} parent=1 // pred_region
      %91 = dma.done [#allocation11], 1024
    $region45: #{tpu_custom_call.1} parent=1 // pred_fallthru
      _
    %s92 = sld [smem:[#allocation3]]
    %p93 = scmp.lt.s32.totalorder %s92, 2
    %s94 = scalar_select %p93, %s92, 2
    %s95 = smul.addr %s94, 2
    %s96 = scalar_lea.vmem %s5, %s95
    %s97 = sld [smem:[#allocation3]]
    %s98 = sld [smem:[#allocation3]]
    %p99 = scmp.lt.s32.totalorder %s98, 2
    %s100 = scalar_select %p99, %s98, 2
    %s101 = smul.addr %s100, 2
    %s102 = scalar_lea.vmem %s5, %s101
    %s103 = sld [smem:[#allocation3]]
    %v105 = vld [vmem:[#allocation4] sm:$0xf]
    %v106 = vld [vmem:[#allocation7] sm:$0xff]
    %v107 = vld [vmem:[#allocation7 + $0x8] sm:$0xff]
    %v108 = vld [vmem:[#allocation7 + $0x10] sm:$0xff]
    %v109 = vld [vmem:[#allocation7 + $0x18] sm:$0xff]
    %v110 = vld [vmem:[#allocation7 + $0x20] sm:$0xff]
    %v111 = vld [vmem:[#allocation7 + $0x28] sm:$0xff]
    %v112 = vld [vmem:[#allocation7 + $0x30] sm:$0xff]
    %v113 = vld [vmem:[#allocation7 + $0x38] sm:$0xff]
    %v114 = vld [vmem:[%s3] sm:$0xf]
    %v116 = vlaneseq
    %v117 = vshrl.u32 %v116, 7
    %v118 = vsub.s32 0, %v117
    %v119 = vrot.slane %v114, %v118
    %v120 = vlaneseq
    %v121 = vshrl.u32 %v120, 7
    %v122 = vsub.s32 1, %v121
    %v123 = vrot.slane %v114, %v122
    %v124 = vlaneseq
    %v125 = vshrl.u32 %v124, 7
    %v126 = vsub.s32 2, %v125
    %v127 = vrot.slane %v114, %v126
    %v128 = vlaneseq
    %v129 = vshrl.u32 %v128, 7
    %v130 = vsub.s32 3, %v129
    %v131 = vrot.slane %v114, %v130
    %v144 = vunpack.c.l.b16 %v106
    %v145 = vunpack.c.h.b16 %v106
    %v146 = vunpack.c.l.b16 %v107
    %v147 = vunpack.c.h.b16 %v107
    %v148 = vunpack.c.l.b16 %v108
    %v149 = vunpack.c.h.b16 %v108
    %v150 = vunpack.c.l.b16 %v109
    %v151 = vunpack.c.h.b16 %v109
    %v152 = vunpack.c.l.b16 %v110
    %v153 = vunpack.c.h.b16 %v110
    %v154 = vunpack.c.l.b16 %v111
    %v155 = vunpack.c.h.b16 %v111
    %v156 = vunpack.c.l.b16 %v112
    %v157 = vunpack.c.h.b16 %v112
    %v158 = vunpack.c.l.b16 %v113
    %v159 = vunpack.c.h.b16 %v113
    %v160 = vpack.c.b16 %v148, %v144
    %v161 = vpack.c.b16 %v149, %v145
    %v162 = vpack.c.b16 %v150, %v146
    %v163 = vpack.c.b16 %v151, %v147
    %v164 = vpack.c.b16 %v156, %v152
    %v165 = vpack.c.b16 %v157, %v153
    %v166 = vpack.c.b16 %v158, %v154
    %v167 = vpack.c.b16 %v159, %v155
    %vm176 = vcmask 261120
    %v178 = vsel %vm176, %v105, 0
    %180 = vmatprep.subr.bf16.mxu0 %v161
    %181 = vmatpush1.bf16.msra.mxu0 %v160
    %182 = vmatprep.subr.bf16.mxu0 %v165
    %183 = vmatpush1.bf16.msra.mxu0 %v164
    %184 = vmatprep.subr.bf16.mxu0 0
    %185 = vmatpush1.bf16.msra.mxu0 0
    %186 = vmatprep.subr.bf16.mxu0 0
    %187 = vmatpush1.bf16.msra.mxu0 0
    %188 = vmatprep.subr.bf16.mxu0 0
    %189 = vmatpush1.bf16.msra.mxu0 0
    %190 = vmatprep.subr.bf16.mxu0 0
    %191 = vmatpush1.bf16.msra.mxu0 0
    %192 = vmatprep.subr.bf16.mxu0 0
    %193 = vmatpush1.bf16.msra.mxu0 0
    %194 = vmatprep.subr.bf16.mxu0 0
    %195 = vmatpush1.bf16.msra.mxu0 0
    %196 = vmatprep.subr.bf16.mxu0 0
    %197 = vmatpush1.bf16.msra.mxu0 0
    %198 = vmatprep.subr.bf16.mxu0 0
    %199 = vmatpush1.bf16.msra.mxu0 0
    %200 = vmatprep.subr.bf16.mxu0 0
    %201 = vmatpush1.bf16.msra.mxu0 0
    %202 = vmatprep.subr.bf16.mxu0 0
    %203 = vmatpush1.bf16.msra.mxu0 0
    %204 = vmatprep.subr.bf16.mxu0 0
    %205 = vmatpush1.bf16.msra.mxu0 0
    %206 = vmatprep.subr.bf16.mxu0 0
    %207 = vmatpush1.bf16.msra.mxu0 0
    %208 = vmatprep.subr.bf16.mxu0 0
    %209 = vmatpush1.bf16.msra.mxu0 0
    %210 = vmatprep.subr.bf16.mxu0 0
    %211 = vmatpush1.bf16.msra.mxu0 0
    %212 = vmatprep.mubr.bf16.mxu0 0
    %213 = vmatmul.mubr.bf16.gmra.mrb[0].mxu0 %v178
    %v214 = vpop.f32.mrb[0].mxu0
    %v215 = vadd.f32 %v119, %v214
    %v216 = vpop.f32.mrb[0].mxu0
    %v217 = vadd.f32 %v123, %v216
    %v218 = vpop.f32.mrb[0].mxu0
    %v219 = vpop.f32.mrb[0].mxu0
    %220 = vdwg.mxu0
    %221 = vmatprep.subr.bf16.mxu0 %v163
    %222 = vmatpush1.bf16.msra.mxu0 %v162
    %223 = vmatprep.subr.bf16.mxu0 %v167
    %224 = vmatpush1.bf16.msra.mxu0 %v166
    %225 = vmatprep.subr.bf16.mxu0 0
    %226 = vmatpush1.bf16.msra.mxu0 0
    %227 = vmatprep.subr.bf16.mxu0 0
    %228 = vmatpush1.bf16.msra.mxu0 0
    %229 = vmatprep.subr.bf16.mxu0 0
    %230 = vmatpush1.bf16.msra.mxu0 0
    %231 = vmatprep.subr.bf16.mxu0 0
    %232 = vmatpush1.bf16.msra.mxu0 0
    %233 = vmatprep.subr.bf16.mxu0 0
    %234 = vmatpush1.bf16.msra.mxu0 0
    %235 = vmatprep.subr.bf16.mxu0 0
    %236 = vmatpush1.bf16.msra.mxu0 0
    %237 = vmatprep.subr.bf16.mxu0 0
    %238 = vmatpush1.bf16.msra.mxu0 0
    %239 = vmatprep.subr.bf16.mxu0 0
    %240 = vmatpush1.bf16.msra.mxu0 0
    %241 = vmatprep.subr.bf16.mxu0 0
    %242 = vmatpush1.bf16.msra.mxu0 0
    %243 = vmatprep.subr.bf16.mxu0 0
    %244 = vmatpush1.bf16.msra.mxu0 0
    %245 = vmatprep.subr.bf16.mxu0 0
    %246 = vmatpush1.bf16.msra.mxu0 0
    %247 = vmatprep.subr.bf16.mxu0 0
    %248 = vmatpush1.bf16.msra.mxu0 0
    %249 = vmatprep.subr.bf16.mxu0 0
    %250 = vmatpush1.bf16.msra.mxu0 0
    %251 = vmatprep.subr.bf16.mxu0 0
    %252 = vmatpush1.bf16.msra.mxu0 0
    %253 = vmatprep.mubr.bf16.mxu0 0
    %254 = vmatmul.mubr.bf16.gmra.mrb[0].mxu0 %v178
    %v255 = vpop.f32.mrb[0].mxu0
    %v256 = vadd.f32 %v127, %v255
    %v257 = vpop.f32.mrb[0].mxu0
    %v258 = vadd.f32 %v131, %v257
    %v259 = vpop.f32.mrb[0].mxu0
    %v260 = vpop.f32.mrb[0].mxu0
    %261 = vdwg.mxu0
    %vm262 = vcmp.gt.f32.partialorder %v215, 0.0
    %vm263 = vcmp.gt.f32.partialorder %v217, 0.0
    %vm264 = vcmp.gt.f32.partialorder %v256, 0.0
    %vm265 = vcmp.gt.f32.partialorder %v258, 0.0
    %v266 = vmul.f32 %v215, 0.2
    %v267 = vmul.f32 %v217, 0.2
    %v268 = vmul.f32 %v256, 0.2
    %v269 = vmul.f32 %v258, 0.2
    %v270 = vsel %vm262, %v215, %v266
    %v271 = vsel %vm263, %v217, %v267
    %v272 = vsel %vm264, %v256, %v268
    %v273 = vsel %vm265, %v258, %v269
    %v274 = vpack.c.bf16 %v270, %v270
    %v275 = vpack.c.bf16 %v271, %v271
    %v276 = vpack.c.bf16 %v272, %v272
    %v277 = vpack.c.bf16 %v273, %v273
    %v278 = vld [vmem:[#allocation9] sm:$0xff]
    %v279 = vld [vmem:[#allocation9 + $0x8] sm:$0xff]
    %v280 = vld [vmem:[#allocation9 + $0x10] sm:$0xff]
    %v281 = vld [vmem:[#allocation9 + $0x18] sm:$0xff]
    %v282 = vld [vmem:[#allocation9 + $0x20] sm:$0xff]
    %v283 = vld [vmem:[#allocation9 + $0x28] sm:$0xff]
    %v284 = vld [vmem:[#allocation9 + $0x30] sm:$0xff]
    %v285 = vld [vmem:[#allocation9 + $0x38] sm:$0xff]
    %v286 = vld [vmem:[#allocation9 + $0x40] sm:$0xff]
    %v287 = vld [vmem:[#allocation9 + $0x48] sm:$0xff]
    %v288 = vld [vmem:[#allocation9 + $0x50] sm:$0xff]
    %v289 = vld [vmem:[#allocation9 + $0x58] sm:$0xff]
    %v290 = vld [vmem:[#allocation9 + $0x60] sm:$0xff]
    %v291 = vld [vmem:[#allocation9 + $0x68] sm:$0xff]
    %v292 = vld [vmem:[#allocation9 + $0x70] sm:$0xff]
    %v293 = vld [vmem:[#allocation9 + $0x78] sm:$0xff]
    %v294 = vld [vmem:[#allocation9 + $0x80] sm:$0xff]
    %v295 = vld [vmem:[#allocation9 + $0x88] sm:$0xff]
    %v296 = vld [vmem:[#allocation9 + $0x90] sm:$0xff]
    %v297 = vld [vmem:[#allocation9 + $0x98] sm:$0xff]
    %v298 = vld [vmem:[#allocation9 + $0xa0] sm:$0xff]
    %v299 = vld [vmem:[#allocation9 + $0xa8] sm:$0xff]
    %v300 = vld [vmem:[#allocation9 + $0xb0] sm:$0xff]
    %v301 = vld [vmem:[#allocation9 + $0xb8] sm:$0xff]
    %v302 = vld [vmem:[#allocation9 + $0xc0] sm:$0xff]
    %v303 = vld [vmem:[#allocation9 + $0xc8] sm:$0xff]
    %v304 = vld [vmem:[#allocation9 + $0xd0] sm:$0xff]
    %v305 = vld [vmem:[#allocation9 + $0xd8] sm:$0xff]
    %v306 = vld [vmem:[#allocation9 + $0xe0] sm:$0xff]
    %v307 = vld [vmem:[#allocation9 + $0xe8] sm:$0xff]
    %v308 = vld [vmem:[#allocation9 + $0xf0] sm:$0xff]
    %v309 = vld [vmem:[#allocation9 + $0xf8] sm:$0xff]
    %v310 = vld [vmem:[#allocation9 + $0x100] sm:$0xff]
    %v311 = vld [vmem:[#allocation9 + $0x108] sm:$0xff]
    %v312 = vld [vmem:[#allocation9 + $0x110] sm:$0xff]
    %v313 = vld [vmem:[#allocation9 + $0x118] sm:$0xff]
    %v314 = vld [vmem:[#allocation9 + $0x120] sm:$0xff]
    %v315 = vld [vmem:[#allocation9 + $0x128] sm:$0xff]
    %v316 = vld [vmem:[#allocation9 + $0x130] sm:$0xff]
    %v317 = vld [vmem:[#allocation9 + $0x138] sm:$0xff]
    %v318 = vld [vmem:[#allocation9 + $0x140] sm:$0xff]
    %v319 = vld [vmem:[#allocation9 + $0x148] sm:$0xff]
    %v320 = vld [vmem:[#allocation9 + $0x150] sm:$0xff]
    %v321 = vld [vmem:[#allocation9 + $0x158] sm:$0xff]
    %v322 = vld [vmem:[#allocation9 + $0x160] sm:$0xff]
    %v323 = vld [vmem:[#allocation9 + $0x168] sm:$0xff]
    %v324 = vld [vmem:[#allocation9 + $0x170] sm:$0xff]
    %v325 = vld [vmem:[#allocation9 + $0x178] sm:$0xff]
    %v326 = vld [vmem:[#allocation9 + $0x180] sm:$0xff]
    %v327 = vld [vmem:[#allocation9 + $0x188] sm:$0xff]
    %v328 = vld [vmem:[#allocation9 + $0x190] sm:$0xff]
    %v329 = vld [vmem:[#allocation9 + $0x198] sm:$0xff]
    %v330 = vld [vmem:[#allocation9 + $0x1a0] sm:$0xff]
    %v331 = vld [vmem:[#allocation9 + $0x1a8] sm:$0xff]
    %v332 = vld [vmem:[#allocation9 + $0x1b0] sm:$0xff]
    %v333 = vld [vmem:[#allocation9 + $0x1b8] sm:$0xff]
    %v334 = vld [vmem:[#allocation9 + $0x1c0] sm:$0xff]
    %v335 = vld [vmem:[#allocation9 + $0x1c8] sm:$0xff]
    %v336 = vld [vmem:[#allocation9 + $0x1d0] sm:$0xff]
    %v337 = vld [vmem:[#allocation9 + $0x1d8] sm:$0xff]
    %v338 = vld [vmem:[#allocation9 + $0x1e0] sm:$0xff]
    %v339 = vld [vmem:[#allocation9 + $0x1e8] sm:$0xff]
    %v340 = vld [vmem:[#allocation9 + $0x1f0] sm:$0xff]
    %v341 = vld [vmem:[#allocation9 + $0x1f8] sm:$0xff]
    %v342 = vld [vmem:[%s102] sm:$0x3]
    %v344 = vlaneseq
    %v345 = vshrl.u32 %v344, 7
    %v346 = vsub.s32 0, %v345
    %v347 = vrot.slane %v342, %v346
    %v348 = vlaneseq
    %v349 = vshrl.u32 %v348, 7
    %v350 = vsub.s32 1, %v349
    %v351 = vrot.slane %v342, %v350
    %v418 = vunpack.c.l.b16 %v278
    %v419 = vunpack.c.h.b16 %v278
    %v420 = vunpack.c.l.b16 %v279
    %v421 = vunpack.c.h.b16 %v279
    %v422 = vunpack.c.l.b16 %v280
    %v423 = vunpack.c.h.b16 %v280
    %v424 = vunpack.c.l.b16 %v281
    %v425 = vunpack.c.h.b16 %v281
    %v426 = vunpack.c.l.b16 %v282
    %v427 = vunpack.c.h.b16 %v282
    %v428 = vunpack.c.l.b16 %v283
    %v429 = vunpack.c.h.b16 %v283
    %v430 = vunpack.c.l.b16 %v284
    %v431 = vunpack.c.h.b16 %v284
    %v432 = vunpack.c.l.b16 %v285
    %v433 = vunpack.c.h.b16 %v285
    %v434 = vunpack.c.l.b16 %v286
    %v435 = vunpack.c.h.b16 %v286
    %v436 = vunpack.c.l.b16 %v287
    %v437 = vunpack.c.h.b16 %v287
    %v438 = vunpack.c.l.b16 %v288
    %v439 = vunpack.c.h.b16 %v288
    %v440 = vunpack.c.l.b16 %v289
    %v441 = vunpack.c.h.b16 %v289
    %v442 = vunpack.c.l.b16 %v290
    %v443 = vunpack.c.h.b16 %v290
    %v444 = vunpack.c.l.b16 %v291
    %v445 = vunpack.c.h.b16 %v291
    %v446 = vunpack.c.l.b16 %v292
    %v447 = vunpack.c.h.b16 %v292
    %v448 = vunpack.c.l.b16 %v293
    %v449 = vunpack.c.h.b16 %v293
    %v450 = vunpack.c.l.b16 %v294
    %v451 = vunpack.c.h.b16 %v294
    %v452 = vunpack.c.l.b16 %v295
    %v453 = vunpack.c.h.b16 %v295
    %v454 = vunpack.c.l.b16 %v296
    %v455 = vunpack.c.h.b16 %v296
    %v456 = vunpack.c.l.b16 %v297
    %v457 = vunpack.c.h.b16 %v297
    %v458 = vunpack.c.l.b16 %v298
    %v459 = vunpack.c.h.b16 %v298
    %v460 = vunpack.c.l.b16 %v299
    %v461 = vunpack.c.h.b16 %v299
    %v462 = vunpack.c.l.b16 %v300
    %v463 = vunpack.c.h.b16 %v300
    %v464 = vunpack.c.l.b16 %v301
    %v465 = vunpack.c.h.b16 %v301
    %v466 = vunpack.c.l.b16 %v302
    %v467 = vunpack.c.h.b16 %v302
    %v468 = vunpack.c.l.b16 %v303
    %v469 = vunpack.c.h.b16 %v303
    %v470 = vunpack.c.l.b16 %v304
    %v471 = vunpack.c.h.b16 %v304
    %v472 = vunpack.c.l.b16 %v305
    %v473 = vunpack.c.h.b16 %v305
    %v474 = vunpack.c.l.b16 %v306
    %v475 = vunpack.c.h.b16 %v306
    %v476 = vunpack.c.l.b16 %v307
    %v477 = vunpack.c.h.b16 %v307
    %v478 = vunpack.c.l.b16 %v308
    %v479 = vunpack.c.h.b16 %v308
    %v480 = vunpack.c.l.b16 %v309
    %v481 = vunpack.c.h.b16 %v309
    %v482 = vunpack.c.l.b16 %v310
    %v483 = vunpack.c.h.b16 %v310
    %v484 = vunpack.c.l.b16 %v311
    %v485 = vunpack.c.h.b16 %v311
    %v486 = vunpack.c.l.b16 %v312
    %v487 = vunpack.c.h.b16 %v312
    %v488 = vunpack.c.l.b16 %v313
    %v489 = vunpack.c.h.b16 %v313
    %v490 = vunpack.c.l.b16 %v314
    %v491 = vunpack.c.h.b16 %v314
    %v492 = vunpack.c.l.b16 %v315
    %v493 = vunpack.c.h.b16 %v315
    %v494 = vunpack.c.l.b16 %v316
    %v495 = vunpack.c.h.b16 %v316
    %v496 = vunpack.c.l.b16 %v317
    %v497 = vunpack.c.h.b16 %v317
    %v498 = vunpack.c.l.b16 %v318
    %v499 = vunpack.c.h.b16 %v318
    %v500 = vunpack.c.l.b16 %v319
    %v501 = vunpack.c.h.b16 %v319
    %v502 = vunpack.c.l.b16 %v320
    %v503 = vunpack.c.h.b16 %v320
    %v504 = vunpack.c.l.b16 %v321
    %v505 = vunpack.c.h.b16 %v321
    %v506 = vunpack.c.l.b16 %v322
    %v507 = vunpack.c.h.b16 %v322
    %v508 = vunpack.c.l.b16 %v323
    %v509 = vunpack.c.h.b16 %v323
    %v510 = vunpack.c.l.b16 %v324
    %v511 = vunpack.c.h.b16 %v324
    %v512 = vunpack.c.l.b16 %v325
    %v513 = vunpack.c.h.b16 %v325
    %v514 = vunpack.c.l.b16 %v326
    %v515 = vunpack.c.h.b16 %v326
    %v516 = vunpack.c.l.b16 %v327
    %v517 = vunpack.c.h.b16 %v327
    %v518 = vunpack.c.l.b16 %v328
    %v519 = vunpack.c.h.b16 %v328
    %v520 = vunpack.c.l.b16 %v329
    %v521 = vunpack.c.h.b16 %v329
    %v522 = vunpack.c.l.b16 %v330
    %v523 = vunpack.c.h.b16 %v330
    %v524 = vunpack.c.l.b16 %v331
    %v525 = vunpack.c.h.b16 %v331
    %v526 = vunpack.c.l.b16 %v332
    %v527 = vunpack.c.h.b16 %v332
    %v528 = vunpack.c.l.b16 %v333
    %v529 = vunpack.c.h.b16 %v333
    %v530 = vunpack.c.l.b16 %v334
    %v531 = vunpack.c.h.b16 %v334
    %v532 = vunpack.c.l.b16 %v335
    %v533 = vunpack.c.h.b16 %v335
    %v534 = vunpack.c.l.b16 %v336
    %v535 = vunpack.c.h.b16 %v336
    %v536 = vunpack.c.l.b16 %v337
    %v537 = vunpack.c.h.b16 %v337
    %v538 = vunpack.c.l.b16 %v338
    %v539 = vunpack.c.h.b16 %v338
    %v540 = vunpack.c.l.b16 %v339
    %v541 = vunpack.c.h.b16 %v339
    %v542 = vunpack.c.l.b16 %v340
    %v543 = vunpack.c.h.b16 %v340
    %v544 = vunpack.c.l.b16 %v341
    %v545 = vunpack.c.h.b16 %v341
    %v546 = vpack.c.b16 %v420, %v418
    %v547 = vpack.c.b16 %v421, %v419
    %v548 = vpack.c.b16 %v424, %v422
    %v549 = vpack.c.b16 %v425, %v423
    %v550 = vpack.c.b16 %v428, %v426
    %v551 = vpack.c.b16 %v429, %v427
    %v552 = vpack.c.b16 %v432, %v430
    %v553 = vpack.c.b16 %v433, %v431
    %v554 = vpack.c.b16 %v436, %v434
    %v555 = vpack.c.b16 %v437, %v435
    %v556 = vpack.c.b16 %v440, %v438
    %v557 = vpack.c.b16 %v441, %v439
    %v558 = vpack.c.b16 %v444, %v442
    %v559 = vpack.c.b16 %v445, %v443
    %v560 = vpack.c.b16 %v448, %v446
    %v561 = vpack.c.b16 %v449, %v447
    %v562 = vpack.c.b16 %v452, %v450
    %v563 = vpack.c.b16 %v453, %v451
    %v564 = vpack.c.b16 %v456, %v454
    %v565 = vpack.c.b16 %v457, %v455
    %v566 = vpack.c.b16 %v460, %v458
    %v567 = vpack.c.b16 %v461, %v459
    %v568 = vpack.c.b16 %v464, %v462
    %v569 = vpack.c.b16 %v465, %v463
    %v570 = vpack.c.b16 %v468, %v466
    %v571 = vpack.c.b16 %v469, %v467
    %v572 = vpack.c.b16 %v472, %v470
    %v573 = vpack.c.b16 %v473, %v471
    %v574 = vpack.c.b16 %v476, %v474
    %v575 = vpack.c.b16 %v477, %v475
    %v576 = vpack.c.b16 %v480, %v478
    %v577 = vpack.c.b16 %v481, %v479
    %v578 = vpack.c.b16 %v484, %v482
    %v579 = vpack.c.b16 %v485, %v483
    %v580 = vpack.c.b16 %v488, %v486
    %v581 = vpack.c.b16 %v489, %v487
    %v582 = vpack.c.b16 %v492, %v490
    %v583 = vpack.c.b16 %v493, %v491
    %v584 = vpack.c.b16 %v496, %v494
    %v585 = vpack.c.b16 %v497, %v495
    %v586 = vpack.c.b16 %v500, %v498
    %v587 = vpack.c.b16 %v501, %v499
    %v588 = vpack.c.b16 %v504, %v502
    %v589 = vpack.c.b16 %v505, %v503
    %v590 = vpack.c.b16 %v508, %v506
    %v591 = vpack.c.b16 %v509, %v507
    %v592 = vpack.c.b16 %v512, %v510
    %v593 = vpack.c.b16 %v513, %v511
    %v594 = vpack.c.b16 %v516, %v514
    %v595 = vpack.c.b16 %v517, %v515
    %v596 = vpack.c.b16 %v520, %v518
    %v597 = vpack.c.b16 %v521, %v519
    %v598 = vpack.c.b16 %v524, %v522
    %v599 = vpack.c.b16 %v525, %v523
    %v600 = vpack.c.b16 %v528, %v526
    %v601 = vpack.c.b16 %v529, %v527
    %v602 = vpack.c.b16 %v532, %v530
    %v603 = vpack.c.b16 %v533, %v531
    %v604 = vpack.c.b16 %v536, %v534
    %v605 = vpack.c.b16 %v537, %v535
    %v606 = vpack.c.b16 %v540, %v538
    %v607 = vpack.c.b16 %v541, %v539
    %v608 = vpack.c.b16 %v544, %v542
    %v609 = vpack.c.b16 %v545, %v543
    %674 = vmatprep.subr.bf16.mxu0 %v547
    %675 = vmatpush1.bf16.msra.mxu0 %v546
    %676 = vmatprep.subr.bf16.mxu0 %v549
    %677 = vmatpush1.bf16.msra.mxu0 %v548
    %678 = vmatprep.subr.bf16.mxu0 %v551
    %679 = vmatpush1.bf16.msra.mxu0 %v550
    %680 = vmatprep.subr.bf16.mxu0 %v553
    %681 = vmatpush1.bf16.msra.mxu0 %v552
    %682 = vmatprep.subr.bf16.mxu0 %v555
    %683 = vmatpush1.bf16.msra.mxu0 %v554
    %684 = vmatprep.subr.bf16.mxu0 %v557
    %685 = vmatpush1.bf16.msra.mxu0 %v556
    %686 = vmatprep.subr.bf16.mxu0 %v559
    %687 = vmatpush1.bf16.msra.mxu0 %v558
    %688 = vmatprep.subr.bf16.mxu0 %v561
    %689 = vmatpush1.bf16.msra.mxu0 %v560
    %690 = vmatprep.subr.bf16.mxu0 %v563
    %691 = vmatpush1.bf16.msra.mxu0 %v562
    %692 = vmatprep.subr.bf16.mxu0 %v565
    %693 = vmatpush1.bf16.msra.mxu0 %v564
    %694 = vmatprep.subr.bf16.mxu0 %v567
    %695 = vmatpush1.bf16.msra.mxu0 %v566
    %696 = vmatprep.subr.bf16.mxu0 %v569
    %697 = vmatpush1.bf16.msra.mxu0 %v568
    %698 = vmatprep.subr.bf16.mxu0 %v571
    %699 = vmatpush1.bf16.msra.mxu0 %v570
    %700 = vmatprep.subr.bf16.mxu0 %v573
    %701 = vmatpush1.bf16.msra.mxu0 %v572
    %702 = vmatprep.subr.bf16.mxu0 %v575
    %703 = vmatpush1.bf16.msra.mxu0 %v574
    %704 = vmatprep.subr.bf16.mxu0 %v577
    %705 = vmatpush1.bf16.msra.mxu0 %v576
    %706 = vmatprep.mubr.bf16.mxu0 %v275
    %707 = vmatmul.mubr.bf16.gmra.mrb[0].mxu0 %v274
    %v708 = vpop.f32.mrb[0].mxu0
    %v709 = vadd.f32 %v347, %v708
    %v710 = vpop.f32.mrb[0].mxu0
    %v711 = vadd.f32 %v351, %v710
    %v712 = vpop.f32.mrb[0].mxu0
    %v713 = vpop.f32.mrb[0].mxu0
    %714 = vdwg.mxu0
    %715 = vmatprep.subr.bf16.mxu0 %v579
    %716 = vmatpush1.bf16.msra.mxu0 %v578
    %717 = vmatprep.subr.bf16.mxu0 %v581
    %718 = vmatpush1.bf16.msra.mxu0 %v580
    %719 = vmatprep.subr.bf16.mxu0 %v583
    %720 = vmatpush1.bf16.msra.mxu0 %v582
    %721 = vmatprep.subr.bf16.mxu0 %v585
    %722 = vmatpush1.bf16.msra.mxu0 %v584
    %723 = vmatprep.subr.bf16.mxu0 %v587
    %724 = vmatpush1.bf16.msra.mxu0 %v586
    %725 = vmatprep.subr.bf16.mxu0 %v589
    %726 = vmatpush1.bf16.msra.mxu0 %v588
    %727 = vmatprep.subr.bf16.mxu0 %v591
    %728 = vmatpush1.bf16.msra.mxu0 %v590
    %729 = vmatprep.subr.bf16.mxu0 %v593
    %730 = vmatpush1.bf16.msra.mxu0 %v592
    %731 = vmatprep.subr.bf16.mxu0 %v595
    %732 = vmatpush1.bf16.msra.mxu0 %v594
    %733 = vmatprep.subr.bf16.mxu0 %v597
    %734 = vmatpush1.bf16.msra.mxu0 %v596
    %735 = vmatprep.subr.bf16.mxu0 %v599
    %736 = vmatpush1.bf16.msra.mxu0 %v598
    %737 = vmatprep.subr.bf16.mxu0 %v601
    %738 = vmatpush1.bf16.msra.mxu0 %v600
    %739 = vmatprep.subr.bf16.mxu0 %v603
    %740 = vmatpush1.bf16.msra.mxu0 %v602
    %741 = vmatprep.subr.bf16.mxu0 %v605
    %742 = vmatpush1.bf16.msra.mxu0 %v604
    %743 = vmatprep.subr.bf16.mxu0 %v607
    %744 = vmatpush1.bf16.msra.mxu0 %v606
    %745 = vmatprep.subr.bf16.mxu0 %v609
    %746 = vmatpush1.bf16.msra.mxu0 %v608
    %747 = vmatprep.mubr.bf16.mxu0 %v277
    %748 = vmatmul.mubr.bf16.gmra.mrb[0].mxu0 %v276
    %v749 = vpop.f32.mrb[0].mxu0
    %v750 = vadd.f32 %v709, %v749
    %v751 = vpop.f32.mrb[0].mxu0
    %v752 = vadd.f32 %v711, %v751
    %v753 = vpop.f32.mrb[0].mxu0
    %v754 = vpop.f32.mrb[0].mxu0
    %755 = vdwg.mxu0
    %vm756 = vcmp.gt.f32.partialorder %v750, 0.0
    %vm757 = vcmp.gt.f32.partialorder %v752, 0.0
    %v758 = vmul.f32 %v750, 0.2
    %v759 = vmul.f32 %v752, 0.2
    %v760 = vsel %vm756, %v750, %v758
    %v761 = vsel %vm757, %v752, %v759
    %v762 = vadd.f32 %v760, %v761
    %v763 = vpack.c.bf16 %v762, %v762
    %v764 = vld [vmem:[#allocation10] sm:$0xf]
    %v765 = vld [vmem:[#allocation10 + $0x4] sm:$0xf]
    %v766 = vld [vmem:[#allocation10 + $0x8] sm:$0xf]
    %v767 = vld [vmem:[#allocation10 + $0xc] sm:$0xf]
    %v768 = vld [vmem:[#allocation10 + $0x10] sm:$0xf]
    %v769 = vld [vmem:[#allocation10 + $0x14] sm:$0xf]
    %v770 = vld [vmem:[#allocation10 + $0x18] sm:$0xf]
    %v771 = vld [vmem:[#allocation10 + $0x1c] sm:$0xf]
    %v772 = vld [vmem:[#allocation10 + $0x20] sm:$0xf]
    %v773 = vld [vmem:[#allocation10 + $0x24] sm:$0xf]
    %v774 = vld [vmem:[#allocation10 + $0x28] sm:$0xf]
    %v775 = vld [vmem:[#allocation10 + $0x2c] sm:$0xf]
    %v776 = vld [vmem:[#allocation10 + $0x30] sm:$0xf]
    %v777 = vld [vmem:[#allocation10 + $0x34] sm:$0xf]
    %v778 = vld [vmem:[#allocation10 + $0x38] sm:$0xf]
    %v779 = vld [vmem:[#allocation10 + $0x3c] sm:$0xf]
    %v780 = vld [vmem:[%s7] sm:$0x1]
    %v782 = vlaneseq
    %v783 = vshrl.u32 %v782, 7
    %v784 = vsub.s32 0, %v783
    %v785 = vrot.slane %v780, %v784
    %v803 = vunpack.c.l.b16 %v764
    %v804 = vunpack.c.l.b16 %v765
    %v805 = vunpack.c.l.b16 %v766
    %v806 = vunpack.c.l.b16 %v767
    %v807 = vunpack.c.l.b16 %v768
    %v808 = vunpack.c.l.b16 %v769
    %v809 = vunpack.c.l.b16 %v770
    %v810 = vunpack.c.l.b16 %v771
    %v811 = vunpack.c.l.b16 %v772
    %v812 = vunpack.c.l.b16 %v773
    %v813 = vunpack.c.l.b16 %v774
    %v814 = vunpack.c.l.b16 %v775
    %v815 = vunpack.c.l.b16 %v776
    %v816 = vunpack.c.l.b16 %v777
    %v817 = vunpack.c.l.b16 %v778
    %v818 = vunpack.c.l.b16 %v779
    %v819 = vpack.c.b16 %v804, %v803
    %v820 = vpack.c.b16 %v806, %v805
    %v821 = vpack.c.b16 %v808, %v807
    %v822 = vpack.c.b16 %v810, %v809
    %v823 = vpack.c.b16 %v812, %v811
    %v824 = vpack.c.b16 %v814, %v813
    %v825 = vpack.c.b16 %v816, %v815
    %v826 = vpack.c.b16 %v818, %v817
    %835 = vmatprep.subr.bf16.mxu0 0
    %836 = vmatpush1.bf16.msra.mxu0 %v819
    %837 = vmatprep.subr.bf16.mxu0 0
    %838 = vmatpush1.bf16.msra.mxu0 %v820
    %839 = vmatprep.subr.bf16.mxu0 0
    %840 = vmatpush1.bf16.msra.mxu0 %v821
    %841 = vmatprep.subr.bf16.mxu0 0
    %842 = vmatpush1.bf16.msra.mxu0 %v822
    %843 = vmatprep.subr.bf16.mxu0 0
    %844 = vmatpush1.bf16.msra.mxu0 %v823
    %845 = vmatprep.subr.bf16.mxu0 0
    %846 = vmatpush1.bf16.msra.mxu0 %v824
    %847 = vmatprep.subr.bf16.mxu0 0
    %848 = vmatpush1.bf16.msra.mxu0 %v825
    %849 = vmatprep.subr.bf16.mxu0 0
    %850 = vmatpush1.bf16.msra.mxu0 %v826
    %851 = vmatprep.subr.bf16.mxu0 0
    %852 = vmatpush1.bf16.msra.mxu0 0
    %853 = vmatprep.subr.bf16.mxu0 0
    %854 = vmatpush1.bf16.msra.mxu0 0
    %855 = vmatprep.subr.bf16.mxu0 0
    %856 = vmatpush1.bf16.msra.mxu0 0
    %857 = vmatprep.subr.bf16.mxu0 0
    %858 = vmatpush1.bf16.msra.mxu0 0
    %859 = vmatprep.subr.bf16.mxu0 0
    %860 = vmatpush1.bf16.msra.mxu0 0
    %861 = vmatprep.subr.bf16.mxu0 0
    %862 = vmatpush1.bf16.msra.mxu0 0
    %863 = vmatprep.subr.bf16.mxu0 0
    %864 = vmatpush1.bf16.msra.mxu0 0
    %865 = vmatprep.subr.bf16.mxu0 0
    %866 = vmatpush1.bf16.msra.mxu0 0
    %867 = vmatprep.mubr.bf16.mxu0 0
    %868 = vmatmul.mubr.bf16.gmra.mrb[0].mxu0 %v763
    %v869 = vpop.f32.mrb[0].mxu0
    %v870 = vadd.f32 %v785, %v869
    %v871 = vpop.f32.mrb[0].mxu0
    %v872 = vpop.f32.mrb[0].mxu0
    %v873 = vpop.f32.mrb[0].mxu0
    %874 = vdwg.mxu0
    %vm875 = vcmp.gt.f32.partialorder %v870, 0.0
    %v876 = vmul.f32 %v870, 0.2
    %v877 = vsel %vm875, %v870, %v876
    %878 = vst [vmem:[#allocation12] sm:$0xff] %v877
    // Predicated region
    $region46: #{tpu_custom_call.1} parent=1 // pred_check
      _
    $region47: #{tpu_custom_call.1} parent=1 // pred_check_branch
      %880 = sbr.rel (0) target = $region49
    $region48: #{tpu_custom_call.1} parent=1 // pred_region
      %s882 = ssub.s32 128, 128
      %883 = vsyncadd [#allocation6], %s882
      %s885 = sshll.u32 [#allocation12], 4
      %s886 = int_to_ptr.vmem [resolvable:$true] %s885
      %888 = dma.vmem_to_hbm [thread:$0]  %s886, 128, %s8, [#allocation6]
    $region49: #{tpu_custom_call.1} parent=1 // pred_fallthru
      _
    // Predicated region
    $region50: #{tpu_custom_call.1} parent=1 // pred_check
      _
    $region51: #{tpu_custom_call.1} parent=1 // pred_check_branch
      %890 = sbr.rel (0) target = $region53
    $region52: #{tpu_custom_call.1} parent=1 // pred_region
      %891 = dma.done [#allocation6], 128
    $region53: #{tpu_custom_call.1} parent=1 // pred_fallthru
      _
    %892 = vsyncpa [#allocation5], 1
    %893 = vsyncpa [#allocation8], 1
    %894 = vsyncpa [#allocation11], 1
    %895 = vsyncpa [#allocation6], 1

</llo_original>
